<compile_context>
chip_gen: v7x
topology: tpu7x:2x2x1
jax: 0.10.0
libtpu: 0.0.40
codegen_flags: <defaults>
</compile_context>

<pallas_src>
import jax
import jax.numpy as jnp
from jax.experimental import pallas as pl
from jax.experimental.pallas import tpu as pltpu


def dot_attention_kernel(v_ref, q_ref, o_ref):
    # v_ref: (TB, T, H), q_ref: (TB, H), o_ref: (TB, H)
    v = v_ref[...].astype(jnp.float32)           # (TB, T, H)
    q = q_ref[...].astype(jnp.float32)           # (TB, H)

    # scores[b, t] = sum_h v[b, t, h] * q[b, h]  -> (TB, T)  (T on lanes)
    scores = jnp.sum(v * q[:, None, :], axis=-1)

    # Numerically-stable softmax over T (lane reduces), all in f32.
    m = jnp.max(scores, axis=-1, keepdims=True)              # (TB, 1)
    e = jnp.exp(scores - m)                                   # (TB, T)
    denom = jnp.sum(e, axis=-1, keepdims=True)                # (TB, 1)

    # out[b, h] = (sum_t e[b, t] * v[b, t, h]) / denom[b]  -> (TB, H)
    num = jnp.sum(e[:, :, None] * v, axis=1)                  # (TB, H)
    o_ref[...] = (num / denom).astype(o_ref.dtype)


def _choose_block_b(B, T, H, itemsize, budget_bytes=4 * 1024 * 1024):
    """Pick TB so the (TB, T, H) values tile is ~budget_bytes.

    Prefers a divisor of B (no batch padding -> no extra HBM traffic);
    falls back to a sublane-friendly size with padding otherwise.
    Returns (block_b, padded_B).
    """
    target = max(1, budget_bytes // max(1, T * H * itemsize))
    if target >= B:
        return B, B
    for cand in range(min(target, B), 0, -1):
        if B % cand == 0 and (cand >= 8 or cand * 4 >= target):
            return cand, B
    tb = max(8, (target // 8) * 8)
    b_pad = ((B + tb - 1) // tb) * tb
    return tb, b_pad


def dot_attention(values, query, *, block_b=None,
                  vmem_limit_bytes=32 * 1024 * 1024):
    """values: (B, T, H), query: (1, B, H)  ->  (B, H)"""
    B, T, H = values.shape
    assert query.shape == (1, B, H), (query.shape, values.shape)
    hidden = query.reshape(B, H)                  # query.squeeze(0), lane-dense 2-D

    itemsize = jnp.dtype(values.dtype).itemsize
    if block_b is None:
        block_b, B_pad = _choose_block_b(B, T, H, itemsize)
    else:
        block_b = max(1, min(block_b, B))
        B_pad = ((B + block_b - 1) // block_b) * block_b

    v_in, q_in = values, hidden
    if B_pad != B:
        # Padded rows are computed on zeros and sliced off afterwards.
        v_in = jnp.pad(values, ((0, B_pad - B), (0, 0), (0, 0)))
        q_in = jnp.pad(hidden, ((0, B_pad - B), (0, 0)))

    grid = (B_pad // block_b,)

    out = pl.pallas_call(
        dot_attention_kernel,
        out_shape=jax.ShapeDtypeStruct((B_pad, H), values.dtype),
        grid_spec=pltpu.PrefetchScalarGridSpec(
            num_scalar_prefetch=0,
            grid=grid,
            in_specs=[
                pl.BlockSpec((block_b, T, H), lambda i: (i, 0, 0)),
                pl.BlockSpec((block_b, H), lambda i: (i, 0)),
            ],
            out_specs=pl.BlockSpec((block_b, H), lambda i: (i, 0)),
        ),
        compiler_params=pltpu.CompilerParams(
            dimension_semantics=("parallel",),
            vmem_limit_bytes=vmem_limit_bytes,
        ),
    )(v_in, q_in)

    return out[:B] if B_pad != B else out


def dot_attention_ref(values, query):
    """Pure-JAX reference mirroring the PyTorch module (full f32 precision)."""
    hidden = jnp.squeeze(query, axis=0)                        # (B, H)
    scores = jnp.einsum("bth,bh->bt", values, hidden,
                        precision=jax.lax.Precision.HIGHEST)   # (B, T)
    weights = jax.nn.softmax(scores, axis=1)
    return jnp.einsum("bth,bt->bh", values, weights,
                      precision=jax.lax.Precision.HIGHEST)     # (B, H)


if __name__ == "__main__":
    key = jax.random.PRNGKey(0)

    # Case 1: small shapes consistent with the module: values (B, T, H), query (1, B, H).
    B, T, H = 2, 8, 32
    k1, k2 = jax.random.split(key)
    values = jax.random.normal(k1, (B, T, H), dtype=jnp.float32)
    query = jax.random.normal(k2, (1, B, H), dtype=jnp.float32)

    out = jax.block_until_ready(dot_attention(values, query))
    ref = dot_attention_ref(values, query)
    assert out.shape == (B, H)
    err = float(jnp.max(jnp.abs(out - ref)))
    assert err < 2e-3, f"mismatch vs reference: {err}"

    # Case 2: multi-block grid path (block_b=8 divides B2 -> no padding).
    B2, T2, H2 = 16, 128, 128
    k3, k4 = jax.random.split(k2)
    values2 = jax.random.normal(k3, (B2, T2, H2), dtype=jnp.float32)
    # 1/sqrt(H) query scale keeps the logits in a realistic range.
    query2 = jax.random.normal(k4, (1, B2, H2), dtype=jnp.float32) * (H2 ** -0.5)

    out2 = jax.block_until_ready(dot_attention(values2, query2, block_b=8))
    ref2 = dot_attention_ref(values2, query2)
    assert out2.shape == (B2, H2)
    err2 = float(jnp.max(jnp.abs(out2 - ref2)))
    assert err2 < 2e-3, f"mismatch vs reference (blocked): {err2}"

    print("KERNEL_OK")
</pallas_src>

<mosaic_0001>
module attributes {stable_mosaic.version = 11 : i64} {
  func.func @dot_attention_kernel(%arg0: i32, %arg1: memref<2x8x32xf32, #tpu.memory_space<vmem>>, %arg2: memref<2x32xf32, #tpu.memory_space<vmem>>, %arg3: memref<2x32xf32, #tpu.memory_space<vmem>>) attributes {dimension_semantics = [#tpu.dimension_semantics<parallel>], iteration_bounds = array<i64: 1>, scalar_prefetch = 0 : i64, scratch_operands = 0 : i64, tpu.core_type = #tpu.core_type<tc>, window_params = [{transform_indices = @transform_0, window_bounds = array<i64: 2, 8, 32>}, {transform_indices = @transform_1, window_bounds = array<i64: 2, 32>}, {transform_indices = @transform_2, window_bounds = array<i64: 2, 32>}]} {
    %c0 = arith.constant 0 : index
    %c0_0 = arith.constant 0 : index
    %c0_1 = arith.constant 0 : index
    %0 = vector.load %arg1[%c0, %c0_0, %c0_1] : memref<2x8x32xf32, #tpu.memory_space<vmem>>, vector<2x8x32xf32>
    %c0_2 = arith.constant 0 : index
    %c0_3 = arith.constant 0 : index
    %1 = vector.load %arg2[%c0_2, %c0_3] : memref<2x32xf32, #tpu.memory_space<vmem>>, vector<2x32xf32>
    %2 = vector.shape_cast %1 : vector<2x32xf32> to vector<2x1x32xf32>
    %3 = vector.broadcast %2 : vector<2x1x32xf32> to vector<2x8x32xf32>
    %4 = arith.mulf %0, %3 : vector<2x8x32xf32>
    %cst = arith.constant dense<0.000000e+00> : vector<2x8xf32>
    %5 = vector.multi_reduction <add>, %4, %cst [2] : vector<2x8x32xf32> to vector<2x8xf32>
    %cst_4 = arith.constant dense<0xFF800000> : vector<2xf32>
    %6 = vector.multi_reduction <maximumf>, %5, %cst_4 [1] : vector<2x8xf32> to vector<2xf32>
    %7 = vector.shape_cast %6 : vector<2xf32> to vector<2x1xf32>
    %8 = vector.broadcast %7 : vector<2x1xf32> to vector<2x8xf32>
    %9 = arith.subf %5, %8 : vector<2x8xf32>
    %10 = math.exp %9 : vector<2x8xf32>
    %cst_5 = arith.constant dense<0.000000e+00> : vector<2xf32>
    %11 = vector.multi_reduction <add>, %10, %cst_5 [1] : vector<2x8xf32> to vector<2xf32>
    %12 = vector.shape_cast %11 : vector<2xf32> to vector<2x1xf32>
    %13 = vector.shape_cast %10 : vector<2x8xf32> to vector<2x8x1xf32>
    %14 = vector.broadcast %13 : vector<2x8x1xf32> to vector<2x8x32xf32>
    %15 = arith.mulf %14, %0 : vector<2x8x32xf32>
    %cst_6 = arith.constant dense<0.000000e+00> : vector<2x32xf32>
    %16 = vector.multi_reduction <add>, %15, %cst_6 [1] : vector<2x8x32xf32> to vector<2x32xf32>
    %17 = vector.broadcast %12 : vector<2x1xf32> to vector<2x32xf32>
    %18 = arith.divf %16, %17 : vector<2x32xf32>
    %c0_7 = arith.constant 0 : index
    %c0_8 = arith.constant 0 : index
    %19 = vector.load %arg3[%c0_7, %c0_8] : memref<2x32xf32, #tpu.memory_space<vmem>>, vector<2x32xf32>
    tpu.vector_store %arg3[%c0_7, %c0_8], %18 {strides = array<i32>} : memref<2x32xf32, #tpu.memory_space<vmem>>, vector<2x32xf32>,
    return
  }
  func.func @transform_0(%arg0: i32) -> (i32, i32, i32) {
    %c0_i32 = arith.constant 0 : i32
    %c0_i32_0 = arith.constant 0 : i32
    %c0_i32_1 = arith.constant 0 : i32
    return %arg0, %c0_i32, %c0_i32_0 : i32, i32, i32
  }
  func.func @transform_1(%arg0: i32) -> (i32, i32) {
    %c0_i32 = arith.constant 0 : i32
    %c0_i32_0 = arith.constant 0 : i32
    return %arg0, %c0_i32 : i32, i32
  }
  func.func @transform_2(%arg0: i32) -> (i32, i32) {
    %c0_i32 = arith.constant 0 : i32
    %c0_i32_0 = arith.constant 0 : i32
    return %arg0, %c0_i32 : i32, i32
  }
}

</mosaic_0001>

<llo_original>
// kernel: tpu_custom_call.1
$region0: #{tpu_custom_call.1}
  #allocation0 [shape = 'u32[]', space=smem, size = 0x4, offset = 0x4, fixed_abs, tag = 'smem constant byte address 0x4 - core index']
  #allocation1 [shape = 'u32[144,128]{1,0:T(1,128)}', space=vmem, size = 0x12000, scoped, tag = 'internal scratch']
  %s0 = inlined_call_operand.hbm [shape: f32[2,8,32], index: 0, kind: input, shape index: {}]
  %s1 = inlined_call_operand.vmem [shape: f32[2,32], index: 1, kind: input, shape index: {}]
  %s2 = inlined_call_operand.hbm [shape: f32[2,32], index: 2, kind: output, shape index: {}]
  %s3 = sld [smem:[#allocation0]]
  $region22: #{tpu_custom_call.1} parent=0
    _
  %s5 = ssub.s32 1, %s3
  %s6 = scalar_select 0, %s5, %s3
  $region1: #{tpu_custom_call.1} parent=0
    #allocation2 [shape = 'u8[8192]{0}', space=vmem, size = 0x2000, scoped, tag = 'input window, operand 0, single buffered']
    #allocation3 [shape = 's32[1]{0}', space=sflag, size = 0x4, scoped, tag = 'scoped memory for tpu_custom_call.1']
    #allocation4 [shape = 's32[1]{0}', space=sflag, size = 0x4, scoped, tag = 'scoped memory for tpu_custom_call.1']
    #allocation5 [shape = 'u8[1024]{0}', space=vmem, size = 0x400, scoped, tag = 'output window, operand 0, single buffered']
    %7 = vsyncpa [#allocation3], 0
    %8 = vsyncpa [#allocation4], 0
    // Predicated region
    $region2: #{tpu_custom_call.1} parent=1 // pred_check
      _
    $region3: #{tpu_custom_call.1} parent=1 // pred_check_branch
      %10 = sbr.rel (0) target = $region5
    $region4: #{tpu_custom_call.1} parent=1 // pred_region
      %s12 = ssub.s32 256, 256
      %13 = vsyncadd [#allocation3], %s12
      %s14 = sshll.u32 [#allocation2], 4
      %s15 = int_to_ptr.vmem [resolvable:$true] %s14
      %20 = dma.hbm_to_vmem [thread:$0]  %s0, 256, %s15, [#allocation3], 128, 128, 8
    $region5: #{tpu_custom_call.1} parent=1 // pred_fallthru
      _
    // Predicated region
    $region6: #{tpu_custom_call.1} parent=1 // pred_check
      _
    $region7: #{tpu_custom_call.1} parent=1 // pred_check_branch
      %22 = sbr.rel (0) target = $region9
    $region8: #{tpu_custom_call.1} parent=1 // pred_region
      _
    $region9: #{tpu_custom_call.1} parent=1 // pred_fallthru
      _
    // Predicated region
    $region10: #{tpu_custom_call.1} parent=1 // pred_check
      _
    $region11: #{tpu_custom_call.1} parent=1 // pred_check_branch
      %24 = sbr.rel (0) target = $region13
    $region12: #{tpu_custom_call.1} parent=1 // pred_region
      %25 = dma.done [#allocation3], 256
    $region13: #{tpu_custom_call.1} parent=1 // pred_fallthru
      _
    %v26 = vld [vmem:[#allocation2] sm:$0xff]
    %v27 = vld [vmem:[#allocation2 + $0x8] sm:$0xff]
    %v28 = vld [vmem:[%s1] sm:$0x3]
    %v31 = vunpack.c.l.s4 1966171168
    %v32 = vunpack.c.0.s8 %v31
    %v33 = vlaneseq
    %v34 = vshrl.u32 %v33, 7
    %v35 = vsub.s32 %v32, %v34
    %v36 = vrot.slane %v28, %v35
    %v37 = vcombine.high %v36, %v36
    %v39 = vunpack.c.l.s4 1966171168
    %v40 = vunpack.c.0.s8 %v39
    %v41 = vlaneseq
    %v42 = vshrl.u32 %v41, 7
    %v43 = vsub.s32 %v40, %v42
    %v44 = vrot.slane %v36, %v43
    %v46 = vunpack.c.l.s4 1966171168
    %v47 = vunpack.c.0.s8 %v46
    %v48 = vlaneseq
    %v49 = vshrl.u32 %v48, 7
    %v50 = vsub.s32 %v47, %v49
    %v51 = vrot.slane %v37, %v50
    %v52 = vlaneseq
    %v53 = vshrl.u32 %v52, 7
    %v54 = vsub.s32 0, %v53
    %v55 = vrot.slane %v44, %v54
    %v56 = vlaneseq
    %v57 = vshrl.u32 %v56, 7
    %v58 = vsub.s32 0, %v57
    %v59 = vrot.slane %v51, %v58
    %v62 = vmul.f32 %v26, %v55
    %v63 = vmul.f32 %v27, %v59
    %vm64 = vcmask 261120
    %v65 = vsel %vm64, %v62, 0.0
    %66 = vadd.xlane.f32.xlu0 %v65
    %v67 = vpop.xlane.xlu0 %66
    %v68 = vsel %vm64, %v63, 0.0
    %69 = vadd.xlane.f32.xlu0 %v68
    %v70 = vpop.xlane.xlu0 %69
    %v73 = vlaneseq
    %v74 = vand.u32 %v73, 127
    %v75 = vlaneseq
    %v76 = vshrl.u32 %v75, 7
    %v77 = vsub.s32 %v74, %v76
    %v78 = vrot.slane %v67, %v77
    %v79 = vlaneseq
    %v80 = vshrl.u32 %v79, 7
    %v81 = vsub.s32 %v74, %v80
    %v82 = vrot.slane %v70, %v81
    %vm83 = vcmask 1041409
    %v84 = vsel %vm83, %v82, %v78
    %vm86 = vcmask 58368
    %v87 = vsel %vm86, %v84, -inf
    %88 = vmax.xlane.f32.xlu0 %v87
    %v89 = vpop.xlane.xlu0 %88
    %v91 = vlaneseq
    %v92 = vshrl.u32 %v91, 7
    %v93 = vsub.s32 0, %v92
    %v94 = vrot.slane %v89, %v93
    %v95 = vlaneseq
    %v96 = vshrl.u32 %v95, 7
    %v97 = vsub.s32 1, %v96
    %v98 = vrot.slane %v89, %v97
    %v101 = vsub.f32 %v67, %v94
    %v102 = vsub.f32 %v70, %v98
    %v103 = vmul.f32 %v101, 1.442695
    %v104 = vpow.pop %v103
    %v105 = vmul.f32 %v102, 1.442695
    %v106 = vpow.pop %v105
    %109 = vset.pattern.permute.xlu0 0
    %110 = vperm.xlu0 %109, %v104
    %v111 = vpop.permute.xlu0 %110
    %112 = vset.pattern.permute.xlu0 0
    %113 = vperm.xlu0 %112, %v106
    %v114 = vpop.permute.xlu0 %113
    %v115 = vlaneseq
    %v116 = vshrl.u32 %v115, 7
    %v117 = vsub.s32 %v74, %v116
    %v118 = vrot.slane %v111, %v117
    %v119 = vlaneseq
    %v120 = vshrl.u32 %v119, 7
    %v121 = vsub.s32 %v74, %v120
    %v122 = vrot.slane %v114, %v121
    %v123 = vsel %vm83, %v122, %v118
    %v125 = vsel %vm86, %v123, 0.0
    %126 = vadd.xlane.f32.xlu0 %v125
    %v127 = vpop.xlane.xlu0 %126
    %v130 = vmul.f32 %v111, %v26
    %v131 = vmul.f32 %v114, %v27
    %v132 = vsel %vm64, %v130, 0.0
    %v133 = vrot.slane %v132, 4
    %v134 = vadd.f32 %v132, %v133
    %v135 = vrot.slane %v134, 2
    %v136 = vadd.f32 %v134, %v135
    %v137 = vrot.slane %v136, 1
    %v138 = vadd.f32 %v136, %v137
    %v139 = vsel %vm64, %v131, 0.0
    %v140 = vrot.slane %v139, 4
    %v141 = vadd.f32 %v139, %v140
    %v142 = vrot.slane %v141, 2
    %v143 = vadd.f32 %v141, %v142
    %v144 = vrot.slane %v143, 1
    %v145 = vadd.f32 %v143, %v144
    %v147 = vrot.slane %v127, 1
    %v150 = vrcp.pop %v127
    %v151 = vmul.f32 %v138, %v150
    %v152 = vrcp.pop %v147
    %v153 = vmul.f32 %v145, %v152
    %v156 = vrot.slane %v153, 7
    %v157 = vsel %vm83, %v156, %v151
    %vm159 = vcmask 254976
    %160 = vst.msk [vmem:[#allocation5] sm:$0x3] %vm159, %v157
    // Predicated region
    $region14: #{tpu_custom_call.1} parent=1 // pred_check
      _
    $region15: #{tpu_custom_call.1} parent=1 // pred_check_branch
      %162 = sbr.rel (0) target = $region17
    $region16: #{tpu_custom_call.1} parent=1 // pred_region
      %s164 = ssub.s32 32, 32
      %165 = vsyncadd [#allocation4], %s164
      %s167 = sshll.u32 [#allocation5], 4
      %s168 = int_to_ptr.vmem [resolvable:$true] %s167
      %170 = dma.vmem_to_hbm [thread:$0]  %s168, 32, %s2, [#allocation4]
    $region17: #{tpu_custom_call.1} parent=1 // pred_fallthru
      _
    // Predicated region
    $region18: #{tpu_custom_call.1} parent=1 // pred_check
      _
    $region19: #{tpu_custom_call.1} parent=1 // pred_check_branch
      %172 = sbr.rel (0) target = $region21
    $region20: #{tpu_custom_call.1} parent=1 // pred_region
      %173 = dma.done [#allocation4], 32
    $region21: #{tpu_custom_call.1} parent=1 // pred_fallthru
      _
    %174 = vsyncpa [#allocation3], 1
    %175 = vsyncpa [#allocation4], 1

</llo_original>
